<compile_context>
chip_gen: v6e
topology: v6e:2x2x1
jax: 0.10.0
libtpu: 0.0.40
codegen_flags: <defaults>
</compile_context>

<pallas_src>
import functools
import math

import jax
import jax.numpy as jnp
import numpy as np
from jax import lax
from jax.experimental import pallas as pl
from jax.experimental.pallas import tpu as pltpu

LANE = 128       # output lane width: last block dim padded to a multiple of this
SUBLANE = 8      # K (contraction) padded to a multiple of this
TM_MAX = 256     # M tile (kept modest for v5e 16MiB / v7x 64MiB VMEM budgets; scales up)


def _round_up(x, m):
    return (x + m - 1) // m * m


# ----------------------------- Pallas kernels ------------------------------ #

def _conv_bn_kernel(p_ref, w_ref, scale_ref, shift_ref, o_ref, *, relu):
    """out_tile = relu?( (patches_tile @ w_tile) * scale + shift )  -- fused conv+BN(+ReLU)."""
    acc = jnp.dot(p_ref[...], w_ref[...], preferred_element_type=jnp.float32)
    y = acc * scale_ref[...] + shift_ref[...]
    if relu:
        y = jnp.maximum(y, 0.0)
    o_ref[...] = y


def _conv_bn_add_relu_kernel(p_ref, w_ref, scale_ref, shift_ref, res_ref, o_ref):
    """out_tile = relu( (patches_tile @ w_tile) * scale + shift + residual_tile )."""
    acc = jnp.dot(p_ref[...], w_ref[...], preferred_element_type=jnp.float32)
    o_ref[...] = jnp.maximum(acc * scale_ref[...] + shift_ref[...] + res_ref[...], 0.0)


# ------------------------------ host-side glue ----------------------------- #

def _im2col_nhwc(x_nhwc, ksize, stride, padding):
    """x: (N, H, W, C) -> patches (N*Ho*Wo, ksize*ksize*C) [K order: kh, kw, C], Ho, Wo."""
    N, H, W, C = x_nhwc.shape
    if padding:
        x_nhwc = jnp.pad(
            x_nhwc, ((0, 0), (padding, padding), (padding, padding), (0, 0)))
    Hp, Wp = H + 2 * padding, W + 2 * padding
    Ho = (Hp - ksize) // stride + 1
    Wo = (Wp - ksize) // stride + 1
    cols = []
    for i in range(ksize):
        for j in range(ksize):
            cols.append(
                x_nhwc[:, i:i + stride * Ho:stride, j:j + stride * Wo:stride, :])
    p = jnp.stack(cols, axis=3)                       # (N, Ho, Wo, kh*kw, C)
    return p.reshape(N * Ho * Wo, ksize * ksize * C), Ho, Wo


def _fold_bn(gamma, beta, mean, var, eps=1e-5):
    scale = gamma / jnp.sqrt(var + eps)
    shift = beta - mean * scale
    return scale, shift


def _fused_conv_bn_matmul(patches, wmat, scale, shift, residual=None, *,
                          relu, compute_dtype=jnp.float32):
    """Tiled fused (patches @ wmat)*scale+shift [+residual] [ReLU].  Returns (M, Cout) f32."""
    M, K = patches.shape
    Cout = wmat.shape[1]

    Kp = _round_up(K, SUBLANE)                        # sublane-aligned contraction
    Np = _round_up(Cout, LANE)                        # lane-dense output columns
    tm = min(TM_MAX, _round_up(M, LANE))              # M tile
    tn = LANE                                         # N tile
    Mp = _round_up(M, tm)

    p = jnp.pad(patches, ((0, Mp - M), (0, Kp - K))).astype(compute_dtype)
    w = jnp.pad(wmat, ((0, Kp - K), (0, Np - Cout))).astype(compute_dtype)
    sc = jnp.pad(scale.reshape(1, Cout).astype(jnp.float32), ((0, 0), (0, Np - Cout)))
    sh = jnp.pad(shift.reshape(1, Cout).astype(jnp.float32), ((0, 0), (0, Np - Cout)))

    in_specs = [
        pl.BlockSpec((tm, Kp), lambda i, j: (i, 0)),       # patches: varies with M tile only
        pl.BlockSpec((Kp, tn), lambda i, j: (0, j)),       # weights: varies with N tile only
        pl.BlockSpec((1, tn), lambda i, j: (0, j)),        # scale:   resident per N tile
        pl.BlockSpec((1, tn), lambda i, j: (0, j)),        # shift:   resident per N tile
    ]
    args = [p, w, sc, sh]
    if residual is None:
        kernel = functools.partial(_conv_bn_kernel, relu=relu)
    else:
        r = jnp.pad(residual.astype(jnp.float32), ((0, Mp - M), (0, Np - Cout)))
        in_specs.append(pl.BlockSpec((tm, tn), lambda i, j: (i, j)))
        args.append(r)
        kernel = _conv_bn_add_relu_kernel

    out = pl.pallas_call(
        kernel,
        out_shape=jax.ShapeDtypeStruct((Mp, Np), jnp.float32),
        grid=(Mp // tm, Np // tn),
        in_specs=in_specs,
        out_specs=pl.BlockSpec((tm, tn), lambda i, j: (i, j)),
        compiler_params=pltpu.CompilerParams(
            dimension_semantics=("parallel", "parallel"),
            vmem_limit_bytes=32 * 1024 * 1024),
    )(*args)
    return out[:M, :Cout]


def _conv_weight_matrix(w_oihw):
    """(Cout, Cin, kh, kw) -> (kh*kw*Cin, Cout), matching _im2col_nhwc K order."""
    Cout = w_oihw.shape[0]
    return jnp.transpose(w_oihw, (2, 3, 1, 0)).reshape(-1, Cout)


def residual_block_forward(x_nchw, params, compute_dtype=jnp.float32):
    """ResidualBlock.forward: relu(left(x) + right(x)).  x: (N, Cin, H, W) NCHW."""
    N = x_nchw.shape[0]
    s = params["first_stride"]
    Cout = params["conv1_w"].shape[0]

    x_nhwc = jnp.transpose(x_nchw, (0, 2, 3, 1))      # channels-last from here on

    # left: conv3x3(stride=s, pad=1) -> BN -> ReLU   (fused kernel #1)
    p1, H1, W1 = _im2col_nhwc(x_nhwc, 3, s, 1)
    sc1, sh1 = _fold_bn(*params["bn1"])
    l1 = _fused_conv_bn_matmul(p1, _conv_weight_matrix(params["conv1_w"]),
                               sc1, sh1, relu=True, compute_dtype=compute_dtype)
    l1_nhwc = l1.reshape(N, H1, W1, Cout)             # stays NHWC: no transpose round-trip

    # right branch -> (M, Cout) residual in the same channels-last layout
    if params["downsample"]:
        pr, _, _ = _im2col_nhwc(x_nhwc, 1, s, 0)
        scr, shr = _fold_bn(*params["bnr"])
        res = _fused_conv_bn_matmul(pr, _conv_weight_matrix(params["convr_w"]),
                                    scr, shr, relu=False, compute_dtype=compute_dtype)
    else:
        res = x_nhwc.reshape(N * H1 * W1, Cout)

    # left: conv3x3(stride=1, pad=1) -> BN, fused with residual add + final ReLU (kernel #2)
    p2, H2, W2 = _im2col_nhwc(l1_nhwc, 3, 1, 1)
    sc2, sh2 = _fold_bn(*params["bn2"])
    out = _fused_conv_bn_matmul(p2, _conv_weight_matrix(params["conv2_w"]),
                                sc2, sh2, residual=res, relu=True,
                                compute_dtype=compute_dtype)
    return jnp.transpose(out.reshape(N, H2, W2, Cout), (0, 3, 1, 2))   # NCHW at API boundary


# ------------------------- parameter init & reference ---------------------- #

def _conv_init(key, out_c, in_c, k):
    bound = math.sqrt(1.0 / (in_c * k * k))
    return jax.random.uniform(key, (out_c, in_c, k, k), jnp.float32,
                              minval=-bound, maxval=bound)


def _bn_init(key, c):
    k1, k2, k3, k4 = jax.random.split(key, 4)
    gamma = jax.random.uniform(k1, (c,), jnp.float32, 0.5, 1.5)
    beta = 0.1 * jax.random.normal(k2, (c,), jnp.float32)
    mean = 0.1 * jax.random.normal(k3, (c,), jnp.float32)
    var = jax.random.uniform(k4, (c,), jnp.float32, 0.5, 1.5)
    return (gamma, beta, mean, var)


def make_params(key, in_feats, out_feats, first_stride):
    keys = jax.random.split(key, 6)
    downsample = not (first_stride == 1 and in_feats == out_feats)
    params = {
        "first_stride": first_stride,
        "downsample": downsample,
        "conv1_w": _conv_init(keys[0], out_feats, in_feats, 3),
        "bn1": _bn_init(keys[1], out_feats),
        "conv2_w": _conv_init(keys[2], out_feats, out_feats, 3),
        "bn2": _bn_init(keys[3], out_feats),
    }
    if downsample:
        params["convr_w"] = _conv_init(keys[4], out_feats, in_feats, 1)
        params["bnr"] = _bn_init(keys[5], out_feats)
    return params


def _ref_conv_bn(x, w, bn, stride, padding, eps=1e-5):
    gamma, beta, mean, var = bn
    y = lax.conv_general_dilated(
        x, w, window_strides=(stride, stride),
        padding=((padding, padding), (padding, padding)),
        dimension_numbers=("NCHW", "OIHW", "NCHW"))
    inv = (1.0 / jnp.sqrt(var + eps))[None, :, None, None]
    return (y - mean[None, :, None, None]) * inv * gamma[None, :, None, None] \
        + beta[None, :, None, None]


def residual_block_reference(x, params):
    s = params["first_stride"]
    l = _ref_conv_bn(x, params["conv1_w"], params["bn1"], s, 1)
    l = jnp.maximum(l, 0.0)
    l = _ref_conv_bn(l, params["conv2_w"], params["bn2"], 1, 1)
    if params["downsample"]:
        r = _ref_conv_bn(x, params["convr_w"], params["bnr"], s, 0)
    else:
        r = x
    return jnp.maximum(l + r, 0.0)


# ----------------------------------- main ----------------------------------- #

if __name__ == "__main__":
    key = jax.random.PRNGKey(0)
    kx, kp1, kp2 = jax.random.split(key, 3)

    # Case 1: downsampling block (in=4 -> out=8, stride=2), x: (2, 4, 16, 16)
    x = jax.random.normal(kx, (2, 4, 16, 16), jnp.float32)
    params_ds = make_params(kp1, in_feats=4, out_feats=8, first_stride=2)
    out_ds = jax.block_until_ready(residual_block_forward(x, params_ds))
    ref_ds = residual_block_reference(x, params_ds)
    assert out_ds.shape == (2, 8, 8, 8)
    np.testing.assert_allclose(np.asarray(out_ds), np.asarray(ref_ds),
                               rtol=1e-4, atol=1e-4)

    # Case 2: identity block (in=out=4, stride=1), x: (2, 4, 16, 16) -> multi-tile M grid
    params_id = make_params(kp2, in_feats=4, out_feats=4, first_stride=1)
    out_id = jax.block_until_ready(residual_block_forward(x, params_id))
    ref_id = residual_block_reference(x, params_id)
    assert out_id.shape == (2, 4, 16, 16)
    np.testing.assert_allclose(np.asarray(out_id), np.asarray(ref_id),
                               rtol=1e-4, atol=1e-4)

    # Case 3: bf16 matmul operands (v6e/v7x MXU fast path), f32 accumulation/epilogue.
    out_bf16 = jax.block_until_ready(
        residual_block_forward(x, params_ds, compute_dtype=jnp.bfloat16))
    np.testing.assert_allclose(np.asarray(out_bf16), np.asarray(ref_ds),
                               rtol=5e-2, atol=5e-2)

    print("KERNEL_OK")
</pallas_src>

<mosaic_0001>
module attributes {stable_mosaic.version = 11 : i64} {
  func.func @_conv_bn_kernel(%arg0: i32, %arg1: i32, %arg2: memref<128x40xf32, #tpu.memory_space<vmem>>, %arg3: memref<40x128xf32, #tpu.memory_space<vmem>>, %arg4: memref<1x128xf32, #tpu.memory_space<vmem>>, %arg5: memref<1x128xf32, #tpu.memory_space<vmem>>, %arg6: memref<128x128xf32, #tpu.memory_space<vmem>>) attributes {dimension_semantics = [#tpu.dimension_semantics<parallel>, #tpu.dimension_semantics<parallel>], iteration_bounds = array<i64: 1, 1>, scalar_prefetch = 0 : i64, scratch_operands = 0 : i64, tpu.core_type = #tpu.core_type<tc>, window_params = [{transform_indices = @transform_0, window_bounds = array<i64: 128, 40>}, {transform_indices = @transform_1, window_bounds = array<i64: 40, 128>}, {transform_indices = @transform_2, window_bounds = array<i64: 1, 128>}, {transform_indices = @transform_3, window_bounds = array<i64: 1, 128>}, {transform_indices = @transform_4, window_bounds = array<i64: 128, 128>}]} {
    %c0 = arith.constant 0 : index
    %c0_0 = arith.constant 0 : index
    %0 = vector.load %arg2[%c0, %c0_0] : memref<128x40xf32, #tpu.memory_space<vmem>>, vector<128x40xf32>
    %c0_1 = arith.constant 0 : index
    %c0_2 = arith.constant 0 : index
    %1 = vector.load %arg3[%c0_1, %c0_2] : memref<40x128xf32, #tpu.memory_space<vmem>>, vector<40x128xf32>
    %cst = arith.constant dense<0.000000e+00> : vector<128x128xf32>
    %2 = tpu.matmul %0, %1, %cst {dimension_numbers = #tpu.dot_dimension_numbers<[1], [0], [0], [1], [0, 0, 1, 1], [], []>} : vector<128x40xf32>, vector<40x128xf32>, vector<128x128xf32> -> vector<128x128xf32>
    %c0_3 = arith.constant 0 : index
    %c0_4 = arith.constant 0 : index
    %3 = vector.load %arg4[%c0_3, %c0_4] : memref<1x128xf32, #tpu.memory_space<vmem>>, vector<1x128xf32>
    %4 = vector.broadcast %3 : vector<1x128xf32> to vector<128x128xf32>
    %5 = arith.mulf %2, %4 : vector<128x128xf32>
    %c0_5 = arith.constant 0 : index
    %c0_6 = arith.constant 0 : index
    %6 = vector.load %arg5[%c0_5, %c0_6] : memref<1x128xf32, #tpu.memory_space<vmem>>, vector<1x128xf32>
    %7 = vector.broadcast %6 : vector<1x128xf32> to vector<128x128xf32>
    %8 = arith.addf %5, %7 : vector<128x128xf32>
    %cst_7 = arith.constant 0.000000e+00 : f32
    %9 = vector.broadcast %cst_7 : f32 to vector<128x128xf32>
    %10 = arith.maximumf %8, %9 : vector<128x128xf32>
    %c0_8 = arith.constant 0 : index
    %c0_9 = arith.constant 0 : index
    %11 = vector.load %arg6[%c0_8, %c0_9] : memref<128x128xf32, #tpu.memory_space<vmem>>, vector<128x128xf32>
    tpu.vector_store %arg6[%c0_8, %c0_9], %10 {strides = array<i32>} : memref<128x128xf32, #tpu.memory_space<vmem>>, vector<128x128xf32>,
    return
  }
  func.func @transform_0(%arg0: i32, %arg1: i32) -> (i32, i32) {
    %c0_i32 = arith.constant 0 : i32
    %c0_i32_0 = arith.constant 0 : i32
    return %arg0, %c0_i32 : i32, i32
  }
  func.func @transform_1(%arg0: i32, %arg1: i32) -> (i32, i32) {
    %c0_i32 = arith.constant 0 : i32
    %c0_i32_0 = arith.constant 0 : i32
    return %c0_i32, %arg1 : i32, i32
  }
  func.func @transform_2(%arg0: i32, %arg1: i32) -> (i32, i32) {
    %c0_i32 = arith.constant 0 : i32
    %c0_i32_0 = arith.constant 0 : i32
    return %c0_i32, %arg1 : i32, i32
  }
  func.func @transform_3(%arg0: i32, %arg1: i32) -> (i32, i32) {
    %c0_i32 = arith.constant 0 : i32
    %c0_i32_0 = arith.constant 0 : i32
    return %c0_i32, %arg1 : i32, i32
  }
  func.func @transform_4(%arg0: i32, %arg1: i32) -> (i32, i32) {
    %c0_i32 = arith.constant 0 : i32
    return %arg0, %arg1 : i32, i32
  }
}

</mosaic_0001>

<llo_original>
// kernel: tpu_custom_call.1
$region0: #{tpu_custom_call.1}
  #allocation0 [shape = 'u32[]', space=smem, size = 0x4, offset = 0x4, fixed_abs, tag = 'smem constant byte address 0x4 - core index']
  #allocation1 [shape = 'u32[144,128]{1,0:T(1,128)}', space=vmem, size = 0x12000, scoped, tag = 'internal scratch']
  %s0 = inlined_call_operand.vmem [shape: f32[128,40], index: 0, kind: input, shape index: {}]
  %s1 = inlined_call_operand.vmem [shape: f32[40,128], index: 1, kind: input, shape index: {}]
  %s2 = inlined_call_operand.vmem [shape: f32[1,128], index: 2, kind: input, shape index: {}]
  %s3 = inlined_call_operand.vmem [shape: f32[1,128], index: 3, kind: input, shape index: {}]
  %s4 = inlined_call_operand.hbm [shape: f32[128,128], index: 4, kind: output, shape index: {}]
  %s5 = sld [smem:[#allocation0]]
  $region26: #{tpu_custom_call.1} parent=0
    _
  %s7 = ssub.s32 1, %s5
  %s8 = scalar_select 0, %s7, %s5
  $region1: #{tpu_custom_call.1} parent=0
    #allocation2 [shape = 'u8[65536]{0}', space=vmem, size = 0x10000, scoped, tag = 'output window, operand 0, single buffered']
    #allocation3 [shape = 's32[1]{0}', space=sflag, size = 0x4, scoped, tag = 'scoped memory for tpu_custom_call.1']
    %9 = vsyncpa [#allocation3], 0
    // Predicated region
    $region2: #{tpu_custom_call.1} parent=1 // pred_check
      _
    $region3: #{tpu_custom_call.1} parent=1 // pred_check_branch
      %11 = sbr.rel (0) target = $region5
    $region4: #{tpu_custom_call.1} parent=1 // pred_region
      _
    $region5: #{tpu_custom_call.1} parent=1 // pred_fallthru
      _
    // Predicated region
    $region6: #{tpu_custom_call.1} parent=1 // pred_check
      _
    $region7: #{tpu_custom_call.1} parent=1 // pred_check_branch
      %13 = sbr.rel (0) target = $region9
    $region8: #{tpu_custom_call.1} parent=1 // pred_region
      _
    $region9: #{tpu_custom_call.1} parent=1 // pred_fallthru
      _
    // Predicated region
    $region10: #{tpu_custom_call.1} parent=1 // pred_check
      _
    $region11: #{tpu_custom_call.1} parent=1 // pred_check_branch
      %15 = sbr.rel (0) target = $region13
    $region12: #{tpu_custom_call.1} parent=1 // pred_region
      _
    $region13: #{tpu_custom_call.1} parent=1 // pred_fallthru
      _
    // Predicated region
    $region14: #{tpu_custom_call.1} parent=1 // pred_check
      _
    $region15: #{tpu_custom_call.1} parent=1 // pred_check_branch
      %17 = sbr.rel (0) target = $region17
    $region16: #{tpu_custom_call.1} parent=1 // pred_region
      _
    $region17: #{tpu_custom_call.1} parent=1 // pred_fallthru
      _
    %v18 = vld [vmem:[%s0] sm:$0xff]
    %v19 = vld [vmem:[%s0 + $0x8] sm:$0xff]
    %v20 = vld [vmem:[%s0 + $0x10] sm:$0xff]
    %v21 = vld [vmem:[%s0 + $0x18] sm:$0xff]
    %v22 = vld [vmem:[%s0 + $0x20] sm:$0xff]
    %v23 = vld [vmem:[%s0 + $0x28] sm:$0xff]
    %v24 = vld [vmem:[%s0 + $0x30] sm:$0xff]
    %v25 = vld [vmem:[%s0 + $0x38] sm:$0xff]
    %v26 = vld [vmem:[%s0 + $0x40] sm:$0xff]
    %v27 = vld [vmem:[%s0 + $0x48] sm:$0xff]
    %v28 = vld [vmem:[%s0 + $0x50] sm:$0xff]
    %v29 = vld [vmem:[%s0 + $0x58] sm:$0xff]
    %v30 = vld [vmem:[%s0 + $0x60] sm:$0xff]
    %v31 = vld [vmem:[%s0 + $0x68] sm:$0xff]
    %v32 = vld [vmem:[%s0 + $0x70] sm:$0xff]
    %v33 = vld [vmem:[%s0 + $0x78] sm:$0xff]
    %v34 = vld [vmem:[%s1] sm:$0xff]
    %v35 = vld [vmem:[%s1 + $0x8] sm:$0xff]
    %v36 = vld [vmem:[%s1 + $0x10] sm:$0xff]
    %v37 = vld [vmem:[%s1 + $0x18] sm:$0xff]
    %v38 = vld [vmem:[%s1 + $0x20] sm:$0xff]
    %vm39 = vcmask 326656
    %v41 = vsel %vm39, %v18, 0
    %v44 = vsel %vm39, %v19, 0
    %v47 = vsel %vm39, %v20, 0
    %v50 = vsel %vm39, %v21, 0
    %v53 = vsel %vm39, %v22, 0
    %v56 = vsel %vm39, %v23, 0
    %v59 = vsel %vm39, %v24, 0
    %v62 = vsel %vm39, %v25, 0
    %v65 = vsel %vm39, %v26, 0
    %v68 = vsel %vm39, %v27, 0
    %v71 = vsel %vm39, %v28, 0
    %v74 = vsel %vm39, %v29, 0
    %v77 = vsel %vm39, %v30, 0
    %v80 = vsel %vm39, %v31, 0
    %v83 = vsel %vm39, %v32, 0
    %v86 = vsel %vm39, %v33, 0
    %88 = vmatprep.subr.mxu0 0.0
    %89 = vmatpush1.msra.mxu0 0.0
    %90 = vmatprep.subr.mxu0 0.0
    %91 = vmatpush1.msra.mxu0 0.0
    %92 = vmatprep.subr.mxu0 0.0
    %93 = vmatpush1.msra.mxu0 0.0
    %94 = vmatprep.subr.mxu0 0.0
    %95 = vmatpush1.msra.mxu0 0.0
    %96 = vmatprep.subr.mxu0 0.0
    %97 = vmatpush1.msra.mxu0 0.0
    %98 = vmatprep.subr.mxu0 0.0
    %99 = vmatpush1.msra.mxu0 0.0
    %100 = vmatprep.subr.mxu0 0.0
    %101 = vmatpush1.msra.mxu0 0.0
    %102 = vmatprep.subr.mxu0 0.0
    %103 = vmatpush1.msra.mxu0 0.0
    %104 = vmatprep.subr.mxu0 0.0
    %105 = vmatpush1.msra.mxu0 0.0
    %106 = vmatprep.subr.mxu0 0.0
    %107 = vmatpush1.msra.mxu0 0.0
    %108 = vmatprep.subr.mxu0 0.0
    %109 = vmatpush1.msra.mxu0 0.0
    %110 = vmatprep.subr.mxu0 0.0
    %111 = vmatpush1.msra.mxu0 %v38
    %112 = vmatprep.subr.mxu0 0.0
    %113 = vmatpush1.msra.mxu0 %v37
    %114 = vmatprep.subr.mxu0 0.0
    %115 = vmatpush1.msra.mxu0 %v36
    %116 = vmatprep.subr.mxu0 0.0
    %117 = vmatpush1.msra.mxu0 %v35
    %118 = vmatprep.subr.mxu0 0.0
    %119 = vmatpush1.msra.mxu0 %v34
    %120 = vmatprep.subr.mxu0 0.0
    %121 = vmatpush2.msra.mxu0 0.0
    %122 = vmatprep.subr.mxu0 0.0
    %123 = vmatpush2.msra.mxu0 0.0
    %124 = vmatprep.subr.mxu0 0.0
    %125 = vmatpush2.msra.mxu0 0.0
    %126 = vmatprep.subr.mxu0 0.0
    %127 = vmatpush2.msra.mxu0 0.0
    %128 = vmatprep.subr.mxu0 0.0
    %129 = vmatpush2.msra.mxu0 0.0
    %130 = vmatprep.subr.mxu0 0.0
    %131 = vmatpush2.msra.mxu0 0.0
    %132 = vmatprep.subr.mxu0 0.0
    %133 = vmatpush2.msra.mxu0 0.0
    %134 = vmatprep.subr.mxu0 0.0
    %135 = vmatpush2.msra.mxu0 0.0
    %136 = vmatprep.subr.mxu0 0.0
    %137 = vmatpush2.msra.mxu0 0.0
    %138 = vmatprep.subr.mxu0 0.0
    %139 = vmatpush2.msra.mxu0 0.0
    %140 = vmatprep.subr.mxu0 0.0
    %141 = vmatpush2.msra.mxu0 0.0
    %142 = vmatprep.subr.mxu0 0.0
    %143 = vmatpush2.msra.mxu0 0.0
    %144 = vmatprep.subr.mxu0 0.0
    %145 = vmatpush2.msra.mxu0 0.0
    %146 = vmatprep.subr.mxu0 0.0
    %147 = vmatpush2.msra.mxu0 0.0
    %148 = vmatprep.subr.mxu0 0.0
    %149 = vmatpush2.msra.mxu0 0.0
    %150 = vmatprep.subr.mxu0 0.0
    %151 = vmatpush2.msra.mxu0 0.0
    %152 = vmatprep.mubr.f32.mxu0 0.0
    %153 = vmatmul.mubr.f32.gmra.mxu0 %v41
    %v154 = vpop.f32.mrf.mxu0
    %v155 = vadd.f32 0.0, %v154
    %v156 = vpop.f32.mrf.mxu0
    %157 = vmatprep.mubr.f32.mxu0 0.0
    %158 = vmatmul.mubr.f32.gmra.mxu0 %v44
    %v159 = vpop.f32.mrf.mxu0
    %v160 = vadd.f32 0.0, %v159
    %v161 = vpop.f32.mrf.mxu0
    %162 = vmatprep.mubr.f32.mxu0 0.0
    %163 = vmatmul.mubr.f32.gmra.mxu0 %v47
    %v164 = vpop.f32.mrf.mxu0
    %v165 = vadd.f32 0.0, %v164
    %v166 = vpop.f32.mrf.mxu0
    %167 = vmatprep.mubr.f32.mxu0 0.0
    %168 = vmatmul.mubr.f32.gmra.mxu0 %v50
    %v169 = vpop.f32.mrf.mxu0
    %v170 = vadd.f32 0.0, %v169
    %v171 = vpop.f32.mrf.mxu0
    %172 = vmatprep.mubr.f32.mxu0 0.0
    %173 = vmatmul.mubr.f32.gmra.mxu0 %v53
    %v174 = vpop.f32.mrf.mxu0
    %v175 = vadd.f32 0.0, %v174
    %v176 = vpop.f32.mrf.mxu0
    %177 = vmatprep.mubr.f32.mxu0 0.0
    %178 = vmatmul.mubr.f32.gmra.mxu0 %v56
    %v179 = vpop.f32.mrf.mxu0
    %v180 = vadd.f32 0.0, %v179
    %v181 = vpop.f32.mrf.mxu0
    %182 = vmatprep.mubr.f32.mxu0 0.0
    %183 = vmatmul.mubr.f32.gmra.mxu0 %v59
    %v184 = vpop.f32.mrf.mxu0
    %v185 = vadd.f32 0.0, %v184
    %v186 = vpop.f32.mrf.mxu0
    %187 = vmatprep.mubr.f32.mxu0 0.0
    %188 = vmatmul.mubr.f32.gmra.mxu0 %v62
    %v189 = vpop.f32.mrf.mxu0
    %v190 = vadd.f32 0.0, %v189
    %v191 = vpop.f32.mrf.mxu0
    %192 = vmatprep.mubr.f32.mxu0 0.0
    %193 = vmatmul.mubr.f32.gmra.mxu0 %v65
    %v194 = vpop.f32.mrf.mxu0
    %v195 = vadd.f32 0.0, %v194
    %v196 = vpop.f32.mrf.mxu0
    %197 = vmatprep.mubr.f32.mxu0 0.0
    %198 = vmatmul.mubr.f32.gmra.mxu0 %v68
    %v199 = vpop.f32.mrf.mxu0
    %v200 = vadd.f32 0.0, %v199
    %v201 = vpop.f32.mrf.mxu0
    %202 = vmatprep.mubr.f32.mxu0 0.0
    %203 = vmatmul.mubr.f32.gmra.mxu0 %v71
    %v204 = vpop.f32.mrf.mxu0
    %v205 = vadd.f32 0.0, %v204
    %v206 = vpop.f32.mrf.mxu0
    %207 = vmatprep.mubr.f32.mxu0 0.0
    %208 = vmatmul.mubr.f32.gmra.mxu0 %v74
    %v209 = vpop.f32.mrf.mxu0
    %v210 = vadd.f32 0.0, %v209
    %v211 = vpop.f32.mrf.mxu0
    %212 = vmatprep.mubr.f32.mxu0 0.0
    %213 = vmatmul.mubr.f32.gmra.mxu0 %v77
    %v214 = vpop.f32.mrf.mxu0
    %v215 = vadd.f32 0.0, %v214
    %v216 = vpop.f32.mrf.mxu0
    %217 = vmatprep.mubr.f32.mxu0 0.0
    %218 = vmatmul.mubr.f32.gmra.mxu0 %v80
    %v219 = vpop.f32.mrf.mxu0
    %v220 = vadd.f32 0.0, %v219
    %v221 = vpop.f32.mrf.mxu0
    %222 = vmatprep.mubr.f32.mxu0 0.0
    %223 = vmatmul.mubr.f32.gmra.mxu0 %v83
    %v224 = vpop.f32.mrf.mxu0
    %v225 = vadd.f32 0.0, %v224
    %v226 = vpop.f32.mrf.mxu0
    %227 = vmatprep.mubr.f32.mxu0 0.0
    %228 = vmatmul.mubr.f32.gmra.mxu0 %v86
    %v229 = vpop.f32.mrf.mxu0
    %v230 = vadd.f32 0.0, %v229
    %v231 = vpop.f32.mrf.mxu0
    %232 = vdwg.mxu0
    %v233 = vld [vmem:[%s2] sm:$0x1]
    %v235 = vlaneseq
    %v236 = vshrl.u32 %v235, 7
    %v237 = vsub.s32 0, %v236
    %v238 = vrot.slane %v233, %v237
    %v240 = vmul.f32 %v155, %v238
    %v241 = vmul.f32 %v160, %v238
    %v242 = vmul.f32 %v165, %v238
    %v243 = vmul.f32 %v170, %v238
    %v244 = vmul.f32 %v175, %v238
    %v245 = vmul.f32 %v180, %v238
    %v246 = vmul.f32 %v185, %v238
    %v247 = vmul.f32 %v190, %v238
    %v248 = vmul.f32 %v195, %v238
    %v249 = vmul.f32 %v200, %v238
    %v250 = vmul.f32 %v205, %v238
    %v251 = vmul.f32 %v210, %v238
    %v252 = vmul.f32 %v215, %v238
    %v253 = vmul.f32 %v220, %v238
    %v254 = vmul.f32 %v225, %v238
    %v255 = vmul.f32 %v230, %v238
    %v256 = vld [vmem:[%s3] sm:$0x1]
    %v258 = vlaneseq
    %v259 = vshrl.u32 %v258, 7
    %v260 = vsub.s32 0, %v259
    %v261 = vrot.slane %v256, %v260
    %v263 = vadd.f32 %v240, %v261
    %v264 = vadd.f32 %v241, %v261
    %v265 = vadd.f32 %v242, %v261
    %v266 = vadd.f32 %v243, %v261
    %v267 = vadd.f32 %v244, %v261
    %v268 = vadd.f32 %v245, %v261
    %v269 = vadd.f32 %v246, %v261
    %v270 = vadd.f32 %v247, %v261
    %v271 = vadd.f32 %v248, %v261
    %v272 = vadd.f32 %v249, %v261
    %v273 = vadd.f32 %v250, %v261
    %v274 = vadd.f32 %v251, %v261
    %v275 = vadd.f32 %v252, %v261
    %v276 = vadd.f32 %v253, %v261
    %v277 = vadd.f32 %v254, %v261
    %v278 = vadd.f32 %v255, %v261
    %v279 = vmax.f32 %v263, 0.0
    %v280 = vmax.f32 %v264, 0.0
    %v281 = vmax.f32 %v265, 0.0
    %v282 = vmax.f32 %v266, 0.0
    %v283 = vmax.f32 %v267, 0.0
    %v284 = vmax.f32 %v268, 0.0
    %v285 = vmax.f32 %v269, 0.0
    %v286 = vmax.f32 %v270, 0.0
    %v287 = vmax.f32 %v271, 0.0
    %v288 = vmax.f32 %v272, 0.0
    %v289 = vmax.f32 %v273, 0.0
    %v290 = vmax.f32 %v274, 0.0
    %v291 = vmax.f32 %v275, 0.0
    %v292 = vmax.f32 %v276, 0.0
    %v293 = vmax.f32 %v277, 0.0
    %v294 = vmax.f32 %v278, 0.0
    %295 = vst [vmem:[#allocation2] sm:$0xff] %v279
    %296 = vst [vmem:[#allocation2 + $0x8] sm:$0xff] %v280
    %297 = vst [vmem:[#allocation2 + $0x10] sm:$0xff] %v281
    %298 = vst [vmem:[#allocation2 + $0x18] sm:$0xff] %v282
    %299 = vst [vmem:[#allocation2 + $0x20] sm:$0xff] %v283
    %300 = vst [vmem:[#allocation2 + $0x28] sm:$0xff] %v284
    %301 = vst [vmem:[#allocation2 + $0x30] sm:$0xff] %v285
    %302 = vst [vmem:[#allocation2 + $0x38] sm:$0xff] %v286
    %303 = vst [vmem:[#allocation2 + $0x40] sm:$0xff] %v287
    %304 = vst [vmem:[#allocation2 + $0x48] sm:$0xff] %v288
    %305 = vst [vmem:[#allocation2 + $0x50] sm:$0xff] %v289
    %306 = vst [vmem:[#allocation2 + $0x58] sm:$0xff] %v290
    %307 = vst [vmem:[#allocation2 + $0x60] sm:$0xff] %v291
    %308 = vst [vmem:[#allocation2 + $0x68] sm:$0xff] %v292
    %309 = vst [vmem:[#allocation2 + $0x70] sm:$0xff] %v293
    %310 = vst [vmem:[#allocation2 + $0x78] sm:$0xff] %v294
    // Predicated region
    $region18: #{tpu_custom_call.1} parent=1 // pred_check
      _
    $region19: #{tpu_custom_call.1} parent=1 // pred_check_branch
      %312 = sbr.rel (0) target = $region21
    $region20: #{tpu_custom_call.1} parent=1 // pred_region
      %s314 = ssub.s32 2048, 2048
      %315 = vsyncadd [#allocation3], %s314
      %s316 = sshll.u32 [#allocation2], 4
      %s317 = int_to_ptr.vmem [resolvable:$true] %s316
      %322 = dma.vmem_to_hbm [thread:$0]  %s317, 2048, %s4, [#allocation3], 128, 128, 8
    $region21: #{tpu_custom_call.1} parent=1 // pred_fallthru
      _
    // Predicated region
    $region22: #{tpu_custom_call.1} parent=1 // pred_check
      _
    $region23: #{tpu_custom_call.1} parent=1 // pred_check_branch
      %324 = sbr.rel (0) target = $region25
    $region24: #{tpu_custom_call.1} parent=1 // pred_region
      %325 = dma.done [#allocation3], 2048
    $region25: #{tpu_custom_call.1} parent=1 // pred_fallthru
      _
    %326 = vsyncpa [#allocation3], 1

</llo_original>
